<compile_context>
chip_gen: v7x
topology: tpu7x:2x2x1
jax: 0.10.0
libtpu: 0.0.40
codegen_flags: <defaults>
</compile_context>

<pallas_src>
import jax
import jax.numpy as jnp
from jax import lax
from jax.experimental import pallas as pl
from jax.experimental.pallas import tpu as pltpu


def ngram_lm_kernel(x_ref, w1t_ref, b1_ref, w2t_ref, b2_ref, out_ref):
    # x:   (TILE_B, F)  f32   (cast to compute dtype in-kernel, on the VPU)
    # w1t: (F, H)       bf16  ((in, out) layout -> plain (M,K)x(K,N) matmul)
    # b1:  (1, H)       f32
    # w2t: (H, Vp)      bf16
    # b2:  (1, Vp)      f32   (padded lanes hold a huge negative bias)
    # out: (TILE_B, Vp) f32
    x = x_ref[...].astype(w1t_ref.dtype)

    # linear1: x @ w1.T  ==  x @ w1t   (weights pre-transposed once, outside)
    h = jnp.dot(x, w1t_ref[...], preferred_element_type=jnp.float32)
    h = jnp.maximum(h + b1_ref[...], 0.0)

    # linear2: h @ w2.T  ==  h @ w2t, bf16 operands, f32 accumulation.
    logits = jnp.dot(h.astype(w2t_ref.dtype), w2t_ref[...],
                     preferred_element_type=jnp.float32) + b2_ref[...]

    # Numerically stable log_softmax along the vocab (lane) axis.
    m = jnp.max(logits, axis=-1, keepdims=True)
    shifted = logits - m
    lse = jnp.log(jnp.sum(jnp.exp(shifted), axis=-1, keepdims=True))
    out_ref[...] = (shifted - lse).astype(out_ref.dtype)


def prepare_ngram_params(w1, b1, w2, b2, *, compute_dtype=jnp.bfloat16):
    """One-time parameter prep (do this per model, NOT per forward call).

    w1: (128, F) torch nn.Linear layout, b1: (128,)
    w2: (V, 128) torch nn.Linear layout, b2: (V,)

    Returns a dict with:
      w1t (F, H) bf16, b1 (1, H) f32, w2t (H, Vp) bf16, b2 (1, Vp) f32, V.
    Vocab is padded to a multiple of 128 (lane-dense stores); padded lanes get
    a huge-negative f32 bias so they contribute ~0 to the logsumexp.
    """
    w1 = jnp.asarray(w1, jnp.float32)
    b1 = jnp.asarray(b1, jnp.float32)
    w2 = jnp.asarray(w2, jnp.float32)
    b2 = jnp.asarray(b2, jnp.float32)

    H, F = w1.shape
    V, H2 = w2.shape
    assert H == H2 and b1.shape == (H,) and b2.shape == (V,)

    Vp = ((V + 127) // 128) * 128
    if Vp != V:
        w2 = jnp.pad(w2, ((0, Vp - V), (0, 0)))
        b2 = jnp.pad(b2, (0, Vp - V), constant_values=-1e30)  # stays f32

    return dict(
        w1t=jnp.transpose(w1).astype(compute_dtype),   # (F, H)
        b1=b1.reshape(1, H),                            # (1, H) f32
        w2t=jnp.transpose(w2).astype(compute_dtype),    # (H, Vp)
        b2=b2.reshape(1, Vp),                           # (1, Vp) f32
        vocab_size=V,
    )


def _pick_tile_b(B):
    """Batch tile: big enough to amortize per-step overhead, small enough to
    keep >= 2 grid steps for the 2 TensorCores on v7x when B allows."""
    if B <= 128:
        return max(8, ((B + 7) // 8) * 8)        # one small step
    half = (B // 2 // 128) * 128                 # keep >= 2 steps
    return min(512, max(128, half))


def ngram_lm_forward_batched(x, params):
    """Batched forward.

    x: (B, F) rows of flattened contexts (F = context_size * embedding_dim),
       any float dtype (streamed as f32, cast to bf16 inside the kernel).
    params: output of prepare_ngram_params.
    returns (B, V) f32 log-probabilities (per-row log_softmax).
    """
    w1t, b1, w2t, b2 = params["w1t"], params["b1"], params["w2t"], params["b2"]
    V = params["vocab_size"]

    x = jnp.asarray(x, jnp.float32)
    B, F = x.shape
    F2, H = w1t.shape
    H2, Vp = w2t.shape
    assert F == F2 and H == H2

    tile_b = _pick_tile_b(B)
    Bp = ((B + tile_b - 1) // tile_b) * tile_b
    if Bp != B:
        x = jnp.pad(x, ((0, Bp - B), (0, 0)))

    # Scoped-VMEM budget: double-buffered f32 x/out tiles + resident weights,
    # with 2x headroom, clamped to v7x's 64 MiB physical ceiling.
    vmem_need = (2 * tile_b * (F + Vp) * 4
                 + (F * H + H * Vp) * jnp.dtype(w1t.dtype).itemsize
                 + (H + Vp) * 4)
    vmem_limit = int(min(max(2 * vmem_need, 32 << 20), 64 << 20))

    grid = (Bp // tile_b,)
    out = pl.pallas_call(
        ngram_lm_kernel,
        out_shape=jax.ShapeDtypeStruct((Bp, Vp), jnp.float32),
        grid_spec=pltpu.PrefetchScalarGridSpec(
            num_scalar_prefetch=0,
            grid=grid,
            in_specs=[
                pl.BlockSpec((tile_b, F), lambda i: (i, 0)),   # x tile streams
                pl.BlockSpec((F, H), lambda i: (0, 0)),        # w1t resident
                pl.BlockSpec((1, H), lambda i: (0, 0)),        # b1 resident
                pl.BlockSpec((H, Vp), lambda i: (0, 0)),       # w2t resident
                pl.BlockSpec((1, Vp), lambda i: (0, 0)),       # b2 resident
            ],
            out_specs=pl.BlockSpec((tile_b, Vp), lambda i: (i, 0)),
        ),
        compiler_params=pltpu.CompilerParams(
            dimension_semantics=("parallel",),
            vmem_limit_bytes=vmem_limit),
    )(x, w1t, b1, w2t, b2)

    # Only take the slice round-trip when padding was actually applied.
    if Bp != B or Vp != V:
        out = out[:B, :V]
    return out
    # TODO(synk): for real vocabs (>= ~32K) add a V grid axis with an online
    # log-softmax instead of keeping w2 fully resident (w2 + double-buffered
    # f32 out tiles would not fit v7x's 64 MiB VMEM).


def ngram_lm_forward(inputs, params):
    """Module-exact forward: inputs.view(1, -1) -> (1, vocab) log-probs."""
    x = jnp.asarray(inputs, jnp.float32).reshape(1, -1)
    return ngram_lm_forward_batched(x, params)


def reference_forward(x2d, w1, b1, w2, b2, cast_dtype=None):
    """Pure-JAX reference (torch-layout weights). If cast_dtype is given,
    mimic the kernel's MXU precision (bf16 operands, f32 accumulation)."""
    x = jnp.asarray(x2d, jnp.float32)
    w1 = jnp.asarray(w1, jnp.float32)
    w2 = jnp.asarray(w2, jnp.float32)
    if cast_dtype is not None:
        x, w1c, w2c = x.astype(cast_dtype), w1.astype(cast_dtype), w2.astype(cast_dtype)
    else:
        w1c, w2c = w1, w2
    h = lax.dot_general(x, w1c, (((1,), (1,)), ((), ())),
                        preferred_element_type=jnp.float32) + b1
    h = jnp.maximum(h, 0.0)
    if cast_dtype is not None:
        h = h.astype(cast_dtype)
    logits = lax.dot_general(h, w2c, (((1,), (1,)), ((), ())),
                             preferred_element_type=jnp.float32) + b2
    return jax.nn.log_softmax(logits, axis=-1)


if __name__ == "__main__":
    # Shapes consistent with the module: context_size=2, embedding_dim=64
    # -> in_features = 128; hidden = 128 (fixed in module); vocab_size = 256.
    vocab_size = 256
    embedding_dim = 64
    context_size = 2
    in_features = context_size * embedding_dim
    hidden = 128
    batch = 256  # batched path: 2 grid steps of 128 rows (feeds both v7x TCs)

    key = jax.random.PRNGKey(0)
    k_in, k_w1, k_b1, k_w2, k_b2, k_xb = jax.random.split(key, 6)

    # Deterministic synthetic parameters (torch nn.Linear layouts).
    inputs = jax.random.normal(k_in, (context_size, embedding_dim), jnp.float32)
    w1 = jax.random.normal(k_w1, (hidden, in_features), jnp.float32) * 0.05
    b1 = jax.random.normal(k_b1, (hidden,), jnp.float32) * 0.05
    w2 = jax.random.normal(k_w2, (vocab_size, hidden), jnp.float32) * 0.05
    b2 = jax.random.normal(k_b2, (vocab_size,), jnp.float32) * 0.05

    # One-time parameter prep (cast / pad / transpose hoisted out of forward).
    params = prepare_ngram_params(w1, b1, w2, b2)

    # --- Module-exact single-context forward (B = 1) ---
    log_probs = ngram_lm_forward(inputs, params)
    jax.block_until_ready(log_probs)
    assert log_probs.shape == (1, vocab_size)

    x1 = inputs.reshape(1, -1)
    ref_bf16 = reference_forward(x1, w1, b1, w2, b2, cast_dtype=jnp.bfloat16)
    ref_f32 = reference_forward(x1, w1, b1, w2, b2)
    assert jnp.allclose(log_probs, ref_bf16, atol=2e-3, rtol=2e-3), \
        float(jnp.max(jnp.abs(log_probs - ref_bf16)))
    assert jnp.allclose(log_probs, ref_f32, atol=5e-2, rtol=5e-2), \
        float(jnp.max(jnp.abs(log_probs - ref_f32)))
    assert jnp.allclose(jnp.sum(jnp.exp(log_probs)), 1.0, atol=1e-3)

    # --- Batched forward (many contexts per pallas_call) ---
    xb = jax.random.normal(k_xb, (batch, in_features), jnp.float32)
    log_probs_b = ngram_lm_forward_batched(xb, params)
    jax.block_until_ready(log_probs_b)
    assert log_probs_b.shape == (batch, vocab_size)

    refb_bf16 = reference_forward(xb, w1, b1, w2, b2, cast_dtype=jnp.bfloat16)
    refb_f32 = reference_forward(xb, w1, b1, w2, b2)
    assert jnp.allclose(log_probs_b, refb_bf16, atol=2e-3, rtol=2e-3), \
        float(jnp.max(jnp.abs(log_probs_b - refb_bf16)))
    assert jnp.allclose(log_probs_b, refb_f32, atol=5e-2, rtol=5e-2), \
        float(jnp.max(jnp.abs(log_probs_b - refb_f32)))
    assert jnp.allclose(jnp.sum(jnp.exp(log_probs_b), axis=-1),
                        jnp.ones((batch,)), atol=1e-3)

    # --- Ragged / non-multiple batch exercises the padded path once ---
    xr = xb[:100]
    log_probs_r = ngram_lm_forward_batched(xr, params)
    jax.block_until_ready(log_probs_r)
    assert log_probs_r.shape == (100, vocab_size)
    assert jnp.allclose(log_probs_r, refb_bf16[:100], atol=2e-3, rtol=2e-3)

    print("KERNEL_OK")
</pallas_src>

<mosaic_0001>
module attributes {stable_mosaic.version = 11 : i64} {
  func.func @ngram_lm_kernel(%arg0: i32, %arg1: memref<8x128xf32, #tpu.memory_space<vmem>>, %arg2: memref<128x128xbf16, #tpu.memory_space<vmem>>, %arg3: memref<1x128xf32, #tpu.memory_space<vmem>>, %arg4: memref<128x256xbf16, #tpu.memory_space<vmem>>, %arg5: memref<1x256xf32, #tpu.memory_space<vmem>>, %arg6: memref<8x256xf32, #tpu.memory_space<vmem>>) attributes {dimension_semantics = [#tpu.dimension_semantics<parallel>], iteration_bounds = array<i64: 1>, scalar_prefetch = 0 : i64, scratch_operands = 0 : i64, tpu.core_type = #tpu.core_type<tc>, window_params = [{transform_indices = @transform_0, window_bounds = array<i64: 8, 128>}, {pipeline_mode = #tpu.pipeline_mode<synchronous>, transform_indices = @transform_1, window_bounds = array<i64: 128, 128>}, {pipeline_mode = #tpu.pipeline_mode<synchronous>, transform_indices = @transform_2, window_bounds = array<i64: 1, 128>}, {pipeline_mode = #tpu.pipeline_mode<synchronous>, transform_indices = @transform_3, window_bounds = array<i64: 128, 256>}, {pipeline_mode = #tpu.pipeline_mode<synchronous>, transform_indices = @transform_4, window_bounds = array<i64: 1, 256>}, {transform_indices = @transform_5, window_bounds = array<i64: 8, 256>}]} {
    %c0 = arith.constant 0 : index
    %c0_0 = arith.constant 0 : index
    %0 = vector.load %arg1[%c0, %c0_0] : memref<8x128xf32, #tpu.memory_space<vmem>>, vector<8x128xf32>
    %1 = arith.truncf %0 : vector<8x128xf32> to vector<8x128xbf16>
    %c0_1 = arith.constant 0 : index
    %c0_2 = arith.constant 0 : index
    %2 = vector.load %arg2[%c0_1, %c0_2] : memref<128x128xbf16, #tpu.memory_space<vmem>>, vector<128x128xbf16>
    %cst = arith.constant dense<0.000000e+00> : vector<8x128xf32>
    %3 = tpu.matmul %1, %2, %cst {dimension_numbers = #tpu.dot_dimension_numbers<[1], [0], [0], [1], [0, 0, 1, 1], [], []>} : vector<8x128xbf16>, vector<128x128xbf16>, vector<8x128xf32> -> vector<8x128xf32>
    %c0_3 = arith.constant 0 : index
    %c0_4 = arith.constant 0 : index
    %4 = vector.load %arg3[%c0_3, %c0_4] : memref<1x128xf32, #tpu.memory_space<vmem>>, vector<1x128xf32>
    %5 = vector.broadcast %4 : vector<1x128xf32> to vector<8x128xf32>
    %6 = arith.addf %3, %5 : vector<8x128xf32>
    %cst_5 = arith.constant 0.000000e+00 : f32
    %7 = vector.broadcast %cst_5 : f32 to vector<8x128xf32>
    %8 = arith.maximumf %6, %7 : vector<8x128xf32>
    %9 = arith.truncf %8 : vector<8x128xf32> to vector<8x128xbf16>
    %c0_6 = arith.constant 0 : index
    %c0_7 = arith.constant 0 : index
    %10 = vector.load %arg4[%c0_6, %c0_7] : memref<128x256xbf16, #tpu.memory_space<vmem>>, vector<128x256xbf16>
    %cst_8 = arith.constant dense<0.000000e+00> : vector<8x256xf32>
    %11 = tpu.matmul %9, %10, %cst_8 {dimension_numbers = #tpu.dot_dimension_numbers<[1], [0], [0], [1], [0, 0, 1, 1], [], []>} : vector<8x128xbf16>, vector<128x256xbf16>, vector<8x256xf32> -> vector<8x256xf32>
    %c0_9 = arith.constant 0 : index
    %c0_10 = arith.constant 0 : index
    %12 = vector.load %arg5[%c0_9, %c0_10] : memref<1x256xf32, #tpu.memory_space<vmem>>, vector<1x256xf32>
    %13 = vector.broadcast %12 : vector<1x256xf32> to vector<8x256xf32>
    %14 = arith.addf %11, %13 : vector<8x256xf32>
    %cst_11 = arith.constant dense<0xFF800000> : vector<8xf32>
    %15 = vector.multi_reduction <maximumf>, %14, %cst_11 [1] : vector<8x256xf32> to vector<8xf32>
    %16 = vector.shape_cast %15 : vector<8xf32> to vector<8x1xf32>
    %17 = vector.broadcast %16 : vector<8x1xf32> to vector<8x256xf32>
    %18 = arith.subf %14, %17 : vector<8x256xf32>
    %19 = math.exp %18 : vector<8x256xf32>
    %cst_12 = arith.constant dense<0.000000e+00> : vector<8xf32>
    %20 = vector.multi_reduction <add>, %19, %cst_12 [1] : vector<8x256xf32> to vector<8xf32>
    %21 = vector.shape_cast %20 : vector<8xf32> to vector<8x1xf32>
    %22 = math.log %21 : vector<8x1xf32>
    %23 = vector.broadcast %22 : vector<8x1xf32> to vector<8x256xf32>
    %24 = arith.subf %18, %23 : vector<8x256xf32>
    %c0_13 = arith.constant 0 : index
    %c0_14 = arith.constant 0 : index
    %25 = vector.load %arg6[%c0_13, %c0_14] : memref<8x256xf32, #tpu.memory_space<vmem>>, vector<8x256xf32>
    tpu.vector_store %arg6[%c0_13, %c0_14], %24 {strides = array<i32>} : memref<8x256xf32, #tpu.memory_space<vmem>>, vector<8x256xf32>,
    return
  }
  func.func @transform_0(%arg0: i32) -> (i32, i32) {
    %c0_i32 = arith.constant 0 : i32
    %c0_i32_0 = arith.constant 0 : i32
    return %arg0, %c0_i32 : i32, i32
  }
  func.func @transform_1(%arg0: i32) -> (i32, i32) {
    %c0_i32 = arith.constant 0 : i32
    %c0_i32_0 = arith.constant 0 : i32
    %c0_i32_1 = arith.constant 0 : i32
    return %c0_i32, %c0_i32_0 : i32, i32
  }
  func.func @transform_2(%arg0: i32) -> (i32, i32) {
    %c0_i32 = arith.constant 0 : i32
    %c0_i32_0 = arith.constant 0 : i32
    %c0_i32_1 = arith.constant 0 : i32
    return %c0_i32, %c0_i32_0 : i32, i32
  }
  func.func @transform_3(%arg0: i32) -> (i32, i32) {
    %c0_i32 = arith.constant 0 : i32
    %c0_i32_0 = arith.constant 0 : i32
    %c0_i32_1 = arith.constant 0 : i32
    return %c0_i32, %c0_i32_0 : i32, i32
  }
  func.func @transform_4(%arg0: i32) -> (i32, i32) {
    %c0_i32 = arith.constant 0 : i32
    %c0_i32_0 = arith.constant 0 : i32
    %c0_i32_1 = arith.constant 0 : i32
    return %c0_i32, %c0_i32_0 : i32, i32
  }
  func.func @transform_5(%arg0: i32) -> (i32, i32) {
    %c0_i32 = arith.constant 0 : i32
    %c0_i32_0 = arith.constant 0 : i32
    return %arg0, %c0_i32 : i32, i32
  }
}

</mosaic_0001>

<llo_original>
// kernel: tpu_custom_call.1
$region0: #{tpu_custom_call.1}
  #allocation0 [shape = 'u32[]', space=smem, size = 0x4, offset = 0x4, fixed_abs, tag = 'smem constant byte address 0x4 - core index']
  #allocation1 [shape = 'u32[144,128]{1,0:T(1,128)}', space=vmem, size = 0x12000, scoped, tag = 'internal scratch']
  %s0 = inlined_call_operand.hbm [shape: f32[8,128], index: 0, kind: input, shape index: {}]
  %s1 = inlined_call_operand.hbm [shape: bf16[128,128], index: 1, kind: input, shape index: {}]
  %s2 = inlined_call_operand.vmem [shape: f32[1,128], index: 2, kind: input, shape index: {}]
  %s3 = inlined_call_operand.hbm [shape: bf16[128,256], index: 3, kind: input, shape index: {}]
  %s4 = inlined_call_operand.vmem [shape: f32[1,256], index: 4, kind: input, shape index: {}]
  %s5 = inlined_call_operand.hbm [shape: f32[8,256], index: 5, kind: output, shape index: {}]
  %s6 = sld [smem:[#allocation0]]
  $region42: #{tpu_custom_call.1} parent=0
    _
  %s8 = ssub.s32 1, %s6
  %s9 = scalar_select 0, %s8, %s6
  $region1: #{tpu_custom_call.1} parent=0
    #allocation2 [shape = 'u8[4096]{0}', space=vmem, size = 0x1000, scoped, tag = 'input window, operand 0, single buffered']
    #allocation3 [shape = 's32[1]{0}', space=sflag, size = 0x4, scoped, tag = 'scoped memory for tpu_custom_call.1']
    #allocation4 [shape = 's32[1]{0}', space=sflag, size = 0x4, scoped, tag = 'scoped memory for tpu_custom_call.1']
    #allocation5 [shape = 'u8[32768]{0}', space=vmem, size = 0x8000, scoped, tag = 'input window, operand 1, single buffered']
    #allocation6 [shape = 's32[1]{0}', space=sflag, size = 0x4, scoped, tag = 'scoped memory for tpu_custom_call.1']
    #allocation7 [shape = 'u8[65536]{0}', space=vmem, size = 0x10000, scoped, tag = 'input window, operand 3, single buffered']
    #allocation8 [shape = 'u8[8192]{0}', space=vmem, size = 0x2000, scoped, tag = 'output window, operand 0, single buffered']
    %10 = vsyncpa [#allocation3], 0
    %11 = vsyncpa [#allocation6], 0
    %12 = vsyncpa [#allocation4], 0
    // Predicated region
    $region2: #{tpu_custom_call.1} parent=1 // pred_check
      _
    $region3: #{tpu_custom_call.1} parent=1 // pred_check_branch
      %14 = sbr.rel (0) target = $region5
    $region4: #{tpu_custom_call.1} parent=1 // pred_region
      %s16 = ssub.s32 128, 128
      %17 = vsyncadd [#allocation3], %s16
      %s19 = sshll.u32 [#allocation2], 4
      %s20 = int_to_ptr.vmem [resolvable:$true] %s19
      %22 = dma.hbm_to_vmem [thread:$0]  %s0, 128, %s20, [#allocation3]
    $region5: #{tpu_custom_call.1} parent=1 // pred_fallthru
      _
    // Predicated region
    $region6: #{tpu_custom_call.1} parent=1 // pred_check
      _
    $region7: #{tpu_custom_call.1} parent=1 // pred_check_branch
      %24 = sbr.rel (0) target = $region9
    $region8: #{tpu_custom_call.1} parent=1 // pred_region
      %s26 = ssub.s32 1024, 1024
      %27 = vsyncadd [#allocation6], %s26
      %s28 = sshll.u32 [#allocation5], 4
      %s29 = int_to_ptr.vmem [resolvable:$true] %s28
      %34 = dma.hbm_to_vmem [thread:$0]  %s1, 1024, %s29, [#allocation6], 64, 64, 4
    $region9: #{tpu_custom_call.1} parent=1 // pred_fallthru
      _
    // Predicated region
    $region10: #{tpu_custom_call.1} parent=1 // pred_check
      _
    $region11: #{tpu_custom_call.1} parent=1 // pred_check_branch
      %36 = sbr.rel (0) target = $region13
    $region12: #{tpu_custom_call.1} parent=1 // pred_region
      _
    $region13: #{tpu_custom_call.1} parent=1 // pred_fallthru
      _
    // Predicated region
    $region14: #{tpu_custom_call.1} parent=1 // pred_check
      _
    $region15: #{tpu_custom_call.1} parent=1 // pred_check_branch
      %38 = sbr.rel (0) target = $region17
    $region16: #{tpu_custom_call.1} parent=1 // pred_region
      %s40 = ssub.s32 2048, 2048
      %41 = vsyncadd [#allocation6], %s40
      %s42 = sshll.u32 [#allocation7], 4
      %s43 = int_to_ptr.vmem [resolvable:$true] %s42
      %48 = dma.hbm_to_vmem [thread:$0]  %s3, 2048, %s43, [#allocation6], 128, 128, 8
    $region17: #{tpu_custom_call.1} parent=1 // pred_fallthru
      _
    // Predicated region
    $region18: #{tpu_custom_call.1} parent=1 // pred_check
      _
    $region19: #{tpu_custom_call.1} parent=1 // pred_check_branch
      %50 = sbr.rel (0) target = $region21
    $region20: #{tpu_custom_call.1} parent=1 // pred_region
      _
    $region21: #{tpu_custom_call.1} parent=1 // pred_fallthru
      _
    // Predicated region
    $region22: #{tpu_custom_call.1} parent=1 // pred_check
      _
    $region23: #{tpu_custom_call.1} parent=1 // pred_check_branch
      %52 = sbr.rel (0) target = $region25
    $region24: #{tpu_custom_call.1} parent=1 // pred_region
      %53 = dma.done [#allocation3], 128
    $region25: #{tpu_custom_call.1} parent=1 // pred_fallthru
      _
    // Predicated region
    $region26: #{tpu_custom_call.1} parent=1 // pred_check
      _
    $region27: #{tpu_custom_call.1} parent=1 // pred_check_branch
      %55 = sbr.rel (0) target = $region29
    $region28: #{tpu_custom_call.1} parent=1 // pred_region
      %56 = dma.done [#allocation6], 1024
    $region29: #{tpu_custom_call.1} parent=1 // pred_fallthru
      _
    // Predicated region
    $region30: #{tpu_custom_call.1} parent=1 // pred_check
      _
    $region31: #{tpu_custom_call.1} parent=1 // pred_check_branch
      %58 = sbr.rel (0) target = $region33
    $region32: #{tpu_custom_call.1} parent=1 // pred_region
      %59 = dma.done [#allocation6], 2048
    $region33: #{tpu_custom_call.1} parent=1 // pred_fallthru
      _
    %v61 = vld [vmem:[#allocation2] sm:$0xff]
    %v62 = vpack.c.bf16 %v61, %v61
    %v63 = vld [vmem:[#allocation5] sm:$0xf]
    %v64 = vld [vmem:[#allocation5 + $0x4] sm:$0xf]
    %v65 = vld [vmem:[#allocation5 + $0x8] sm:$0xf]
    %v66 = vld [vmem:[#allocation5 + $0xc] sm:$0xf]
    %v67 = vld [vmem:[#allocation5 + $0x10] sm:$0xf]
    %v68 = vld [vmem:[#allocation5 + $0x14] sm:$0xf]
    %v69 = vld [vmem:[#allocation5 + $0x18] sm:$0xf]
    %v70 = vld [vmem:[#allocation5 + $0x1c] sm:$0xf]
    %v71 = vld [vmem:[#allocation5 + $0x20] sm:$0xf]
    %v72 = vld [vmem:[#allocation5 + $0x24] sm:$0xf]
    %v73 = vld [vmem:[#allocation5 + $0x28] sm:$0xf]
    %v74 = vld [vmem:[#allocation5 + $0x2c] sm:$0xf]
    %v75 = vld [vmem:[#allocation5 + $0x30] sm:$0xf]
    %v76 = vld [vmem:[#allocation5 + $0x34] sm:$0xf]
    %v77 = vld [vmem:[#allocation5 + $0x38] sm:$0xf]
    %v78 = vld [vmem:[#allocation5 + $0x3c] sm:$0xf]
    %v79 = vld [vmem:[%s2] sm:$0x1]
    %v81 = vlaneseq
    %v82 = vshrl.u32 %v81, 7
    %v83 = vsub.s32 0, %v82
    %v84 = vrot.slane %v79, %v83
    %v102 = vunpack.c.l.b16 %v63
    %v103 = vunpack.c.l.b16 %v64
    %v104 = vunpack.c.l.b16 %v65
    %v105 = vunpack.c.l.b16 %v66
    %v106 = vunpack.c.l.b16 %v67
    %v107 = vunpack.c.l.b16 %v68
    %v108 = vunpack.c.l.b16 %v69
    %v109 = vunpack.c.l.b16 %v70
    %v110 = vunpack.c.l.b16 %v71
    %v111 = vunpack.c.l.b16 %v72
    %v112 = vunpack.c.l.b16 %v73
    %v113 = vunpack.c.l.b16 %v74
    %v114 = vunpack.c.l.b16 %v75
    %v115 = vunpack.c.l.b16 %v76
    %v116 = vunpack.c.l.b16 %v77
    %v117 = vunpack.c.l.b16 %v78
    %v118 = vpack.c.b16 %v103, %v102
    %v119 = vpack.c.b16 %v105, %v104
    %v120 = vpack.c.b16 %v107, %v106
    %v121 = vpack.c.b16 %v109, %v108
    %v122 = vpack.c.b16 %v111, %v110
    %v123 = vpack.c.b16 %v113, %v112
    %v124 = vpack.c.b16 %v115, %v114
    %v125 = vpack.c.b16 %v117, %v116
    %134 = vmatprep.subr.bf16.mxu0 0
    %135 = vmatpush1.bf16.msra.mxu0 %v118
    %136 = vmatprep.subr.bf16.mxu0 0
    %137 = vmatpush1.bf16.msra.mxu0 %v119
    %138 = vmatprep.subr.bf16.mxu0 0
    %139 = vmatpush1.bf16.msra.mxu0 %v120
    %140 = vmatprep.subr.bf16.mxu0 0
    %141 = vmatpush1.bf16.msra.mxu0 %v121
    %142 = vmatprep.subr.bf16.mxu0 0
    %143 = vmatpush1.bf16.msra.mxu0 %v122
    %144 = vmatprep.subr.bf16.mxu0 0
    %145 = vmatpush1.bf16.msra.mxu0 %v123
    %146 = vmatprep.subr.bf16.mxu0 0
    %147 = vmatpush1.bf16.msra.mxu0 %v124
    %148 = vmatprep.subr.bf16.mxu0 0
    %149 = vmatpush1.bf16.msra.mxu0 %v125
    %150 = vmatprep.subr.bf16.mxu0 0
    %151 = vmatpush1.bf16.msra.mxu0 0
    %152 = vmatprep.subr.bf16.mxu0 0
    %153 = vmatpush1.bf16.msra.mxu0 0
    %154 = vmatprep.subr.bf16.mxu0 0
    %155 = vmatpush1.bf16.msra.mxu0 0
    %156 = vmatprep.subr.bf16.mxu0 0
    %157 = vmatpush1.bf16.msra.mxu0 0
    %158 = vmatprep.subr.bf16.mxu0 0
    %159 = vmatpush1.bf16.msra.mxu0 0
    %160 = vmatprep.subr.bf16.mxu0 0
    %161 = vmatpush1.bf16.msra.mxu0 0
    %162 = vmatprep.subr.bf16.mxu0 0
    %163 = vmatpush1.bf16.msra.mxu0 0
    %164 = vmatprep.subr.bf16.mxu0 0
    %165 = vmatpush1.bf16.msra.mxu0 0
    %166 = vmatprep.mubr.bf16.mxu0 0
    %167 = vmatmul.mubr.bf16.gmra.mrb[0].mxu0 %v62
    %v168 = vpop.f32.mrb[0].mxu0
    %v169 = vadd.f32 %v84, %v168
    %v170 = vpop.f32.mrb[0].mxu0
    %v171 = vpop.f32.mrb[0].mxu0
    %v172 = vpop.f32.mrb[0].mxu0
    %173 = vdwg.mxu0
    %v174 = vmax.f32 %v169, 0.0
    %v175 = vpack.c.bf16 %v174, %v174
    %v176 = vld [vmem:[#allocation7] sm:$0xff]
    %v177 = vld [vmem:[#allocation7 + $0x8] sm:$0xff]
    %v178 = vld [vmem:[#allocation7 + $0x10] sm:$0xff]
    %v179 = vld [vmem:[#allocation7 + $0x18] sm:$0xff]
    %v180 = vld [vmem:[#allocation7 + $0x20] sm:$0xff]
    %v181 = vld [vmem:[#allocation7 + $0x28] sm:$0xff]
    %v182 = vld [vmem:[#allocation7 + $0x30] sm:$0xff]
    %v183 = vld [vmem:[#allocation7 + $0x38] sm:$0xff]
    %v184 = vld [vmem:[#allocation7 + $0x40] sm:$0xff]
    %v185 = vld [vmem:[#allocation7 + $0x48] sm:$0xff]
    %v186 = vld [vmem:[#allocation7 + $0x50] sm:$0xff]
    %v187 = vld [vmem:[#allocation7 + $0x58] sm:$0xff]
    %v188 = vld [vmem:[#allocation7 + $0x60] sm:$0xff]
    %v189 = vld [vmem:[#allocation7 + $0x68] sm:$0xff]
    %v190 = vld [vmem:[#allocation7 + $0x70] sm:$0xff]
    %v191 = vld [vmem:[#allocation7 + $0x78] sm:$0xff]
    %v192 = vld [vmem:[%s4] sm:$0x3]
    %v194 = vlaneseq
    %v195 = vshrl.u32 %v194, 7
    %v196 = vsub.s32 0, %v195
    %v197 = vrot.slane %v192, %v196
    %v198 = vlaneseq
    %v199 = vshrl.u32 %v198, 7
    %v200 = vsub.s32 1, %v199
    %v201 = vrot.slane %v192, %v200
    %v220 = vunpack.c.l.b16 %v176
    %v221 = vunpack.c.h.b16 %v176
    %v222 = vunpack.c.l.b16 %v177
    %v223 = vunpack.c.h.b16 %v177
    %v224 = vunpack.c.l.b16 %v178
    %v225 = vunpack.c.h.b16 %v178
    %v226 = vunpack.c.l.b16 %v179
    %v227 = vunpack.c.h.b16 %v179
    %v228 = vunpack.c.l.b16 %v180
    %v229 = vunpack.c.h.b16 %v180
    %v230 = vunpack.c.l.b16 %v181
    %v231 = vunpack.c.h.b16 %v181
    %v232 = vunpack.c.l.b16 %v182
    %v233 = vunpack.c.h.b16 %v182
    %v234 = vunpack.c.l.b16 %v183
    %v235 = vunpack.c.h.b16 %v183
    %v236 = vunpack.c.l.b16 %v184
    %v237 = vunpack.c.h.b16 %v184
    %v238 = vunpack.c.l.b16 %v185
    %v239 = vunpack.c.h.b16 %v185
    %v240 = vunpack.c.l.b16 %v186
    %v241 = vunpack.c.h.b16 %v186
    %v242 = vunpack.c.l.b16 %v187
    %v243 = vunpack.c.h.b16 %v187
    %v244 = vunpack.c.l.b16 %v188
    %v245 = vunpack.c.h.b16 %v188
    %v246 = vunpack.c.l.b16 %v189
    %v247 = vunpack.c.h.b16 %v189
    %v248 = vunpack.c.l.b16 %v190
    %v249 = vunpack.c.h.b16 %v190
    %v250 = vunpack.c.l.b16 %v191
    %v251 = vunpack.c.h.b16 %v191
    %v252 = vpack.c.b16 %v222, %v220
    %v253 = vpack.c.b16 %v223, %v221
    %v254 = vpack.c.b16 %v226, %v224
    %v255 = vpack.c.b16 %v227, %v225
    %v256 = vpack.c.b16 %v230, %v228
    %v257 = vpack.c.b16 %v231, %v229
    %v258 = vpack.c.b16 %v234, %v232
    %v259 = vpack.c.b16 %v235, %v233
    %v260 = vpack.c.b16 %v238, %v236
    %v261 = vpack.c.b16 %v239, %v237
    %v262 = vpack.c.b16 %v242, %v240
    %v263 = vpack.c.b16 %v243, %v241
    %v264 = vpack.c.b16 %v246, %v244
    %v265 = vpack.c.b16 %v247, %v245
    %v266 = vpack.c.b16 %v250, %v248
    %v267 = vpack.c.b16 %v251, %v249
    %284 = vmatprep.subr.bf16.mxu0 %v253
    %285 = vmatpush1.bf16.msra.mxu0 %v252
    %286 = vmatprep.subr.bf16.mxu0 %v255
    %287 = vmatpush1.bf16.msra.mxu0 %v254
    %288 = vmatprep.subr.bf16.mxu0 %v257
    %289 = vmatpush1.bf16.msra.mxu0 %v256
    %290 = vmatprep.subr.bf16.mxu0 %v259
    %291 = vmatpush1.bf16.msra.mxu0 %v258
    %292 = vmatprep.subr.bf16.mxu0 %v261
    %293 = vmatpush1.bf16.msra.mxu0 %v260
    %294 = vmatprep.subr.bf16.mxu0 %v263
    %295 = vmatpush1.bf16.msra.mxu0 %v262
    %296 = vmatprep.subr.bf16.mxu0 %v265
    %297 = vmatpush1.bf16.msra.mxu0 %v264
    %298 = vmatprep.subr.bf16.mxu0 %v267
    %299 = vmatpush1.bf16.msra.mxu0 %v266
    %300 = vmatprep.subr.bf16.mxu0 0
    %301 = vmatpush1.bf16.msra.mxu0 0
    %302 = vmatprep.subr.bf16.mxu0 0
    %303 = vmatpush1.bf16.msra.mxu0 0
    %304 = vmatprep.subr.bf16.mxu0 0
    %305 = vmatpush1.bf16.msra.mxu0 0
    %306 = vmatprep.subr.bf16.mxu0 0
    %307 = vmatpush1.bf16.msra.mxu0 0
    %308 = vmatprep.subr.bf16.mxu0 0
    %309 = vmatpush1.bf16.msra.mxu0 0
    %310 = vmatprep.subr.bf16.mxu0 0
    %311 = vmatpush1.bf16.msra.mxu0 0
    %312 = vmatprep.subr.bf16.mxu0 0
    %313 = vmatpush1.bf16.msra.mxu0 0
    %314 = vmatprep.subr.bf16.mxu0 0
    %315 = vmatpush1.bf16.msra.mxu0 0
    %316 = vmatprep.mubr.bf16.mxu0 0
    %317 = vmatmul.mubr.bf16.gmra.mrb[0].mxu0 %v175
    %v318 = vpop.f32.mrb[0].mxu0
    %v319 = vadd.f32 %v197, %v318
    %v320 = vpop.f32.mrb[0].mxu0
    %v321 = vadd.f32 %v201, %v320
    %v322 = vpop.f32.mrb[0].mxu0
    %v323 = vpop.f32.mrb[0].mxu0
    %324 = vdwg.mxu0
    %v325 = vmax.f32 %v319, %v321
    %326 = vmax.xlane.f32.xlu0 %v325
    %v327 = vpop.xlane.xlu0 %326
    %v328 = vsub.f32 %v319, %v327
    %v329 = vsub.f32 %v321, %v327
    %v330 = vmul.f32 %v328, 1.442695
    %v331 = vpow.pop %v330
    %v332 = vmul.f32 %v329, 1.442695
    %v333 = vpow.pop %v332
    %v334 = vadd.f32 %v331, %v333
    %335 = vadd.xlane.f32.xlu0 %v334
    %v336 = vpop.xlane.xlu0 %335
    %v337 = vlog2.pop %v336
    %v338 = vmul.f32 %v337, 0.6931472
    %v339 = vsub.f32 %v328, %v338
    %v340 = vsub.f32 %v329, %v338
    %341 = vst [vmem:[#allocation8] sm:$0xff] %v339
    %342 = vst [vmem:[#allocation8 + $0x8] sm:$0xff] %v340
    // Predicated region
    $region34: #{tpu_custom_call.1} parent=1 // pred_check
      _
    $region35: #{tpu_custom_call.1} parent=1 // pred_check_branch
      %344 = sbr.rel (0) target = $region37
    $region36: #{tpu_custom_call.1} parent=1 // pred_region
      %s346 = ssub.s32 256, 256
      %347 = vsyncadd [#allocation4], %s346
      %s349 = sshll.u32 [#allocation8], 4
      %s350 = int_to_ptr.vmem [resolvable:$true] %s349
      %352 = dma.vmem_to_hbm [thread:$0]  %s350, 256, %s5, [#allocation4]
    $region37: #{tpu_custom_call.1} parent=1 // pred_fallthru
      _
    // Predicated region
    $region38: #{tpu_custom_call.1} parent=1 // pred_check
      _
    $region39: #{tpu_custom_call.1} parent=1 // pred_check_branch
      %354 = sbr.rel (0) target = $region41
    $region40: #{tpu_custom_call.1} parent=1 // pred_region
      %355 = dma.done [#allocation4], 256
    $region41: #{tpu_custom_call.1} parent=1 // pred_fallthru
      _
    %356 = vsyncpa [#allocation3], 1
    %357 = vsyncpa [#allocation6], 1
    %358 = vsyncpa [#allocation4], 1

</llo_original>
